<compile_context>
chip_gen: v6e
topology: v6e:2x2x1
jax: 0.10.0
libtpu: 0.0.40
codegen_flags: <defaults>
</compile_context>

<pallas_src>
import jax
import jax.numpy as jnp
from jax.experimental import pallas as pl
from jax.experimental.pallas import tpu as pltpu

_C_PAD = 128  # lane-dense packed logits width: [order (17) | display (15) | zero pad]


def _gelu(x):
    # TODO(synk): PyTorch nn.GELU() default is the exact erf GELU; using the tanh
    # approximation (guaranteed Mosaic lowering via EUP tanh), max abs diff ~1e-3.
    c = jnp.sqrt(2.0 / jnp.pi).astype(x.dtype)
    return 0.5 * x * (1.0 + jnp.tanh(c * (x + 0.044715 * (x ** 3))))


def _edge_heads_kernel(hid_ref, hid_i_ref, w1t_ref, w1b_ref, b1_ref, w2_ref, b2_ref,
                       out_ref):
    f32 = jnp.float32
    l = hid_ref.shape[1]                 # selected sequence length (j-side rows)
    ti = hid_i_ref.shape[1]              # i-rows handled this grid step
    rows = out_ref.shape[1]              # = ti * l pair rows

    hid = hid_ref[0]                     # (l, dd)  j-side rows (full)
    hid_i = hid_i_ref[0]                 # (ti, dd) i-side rows of this tile

    # Fused (order|display) first linear, split over the concat halves:
    #   z[i*l + j] = hid[i] @ W1_top + hid[j] @ W1_bot + b1
    a = jnp.dot(hid_i, w1t_ref[...], preferred_element_type=f32)     # (ti, Hf)
    bmat = jnp.dot(hid, w1b_ref[...], preferred_element_type=f32)    # (l,  Hf)
    z = a[:, None, :] + bmat[None, :, :] + b1_ref[...]               # (ti, l, Hf)
    h = _gelu(z).reshape(rows, -1)                                   # (ti*l, Hf)

    # Block-diagonal fused second linear -> lane-dense packed logits (unmasked vst).
    out_ref[0] = jnp.dot(h, w2_ref[...], preferred_element_type=f32) + b2_ref[...]


def _pick_i_tile(l, hf):
    """Largest i-tile (divisor of l) whose pair-row block keeps the VMEM working
    set modest and is (8,128)-legal for both the hid_i input block (ti % 8 == 0)
    and the output block (ti*l % 8 == 0); falls back to the full extent."""
    # Keep the two (rows, hf) f32 intermediates (z, h) around <= ~4 MiB.
    max_rows = max(l, min(1024, (4 * 1024 * 1024) // max(1, hf * 8)))
    if l * l <= max_rows:
        return l
    best = l
    for cand in range(8, l, 8):
        if l % cand == 0 and cand * l <= max_rows:
            best = cand
    return best


def edge_info_img_predictor(img_embed, hidden, params):
    del img_embed  # unused by the reference forward (API parity only)
    b, _, dd = hidden.shape
    hid = hidden[:, 3::3, :]                 # default-indices path: index = range(3, l0, 3)
    l = hid.shape[1]
    l2 = l * l
    hf = 2 * dd                              # fused hidden width: order dd | display dd

    n_ord = params["wo2"].shape[1]
    n_dis = params["wd2"].shape[1]
    assert n_ord + n_dis <= _C_PAD

    # Fused first-linear weights (order | display), split by concat half.
    w1t = jnp.concatenate([params["wo1"][:dd], params["wd1"][:dd]], axis=1)   # (dd, hf)
    w1b = jnp.concatenate([params["wo1"][dd:], params["wd1"][dd:]], axis=1)   # (dd, hf)
    b1 = jnp.concatenate([params["bo1"], params["bd1"]], axis=1)              # (1, hf)

    # Block-diagonal second linear packed into a lane-dense (hf, 128) slab.
    w2 = jnp.zeros((hf, _C_PAD), jnp.float32)
    w2 = w2.at[:dd, :n_ord].set(params["wo2"])
    w2 = w2.at[dd:, n_ord:n_ord + n_dis].set(params["wd2"])
    b2 = jnp.zeros((1, _C_PAD), jnp.float32)
    b2 = b2.at[:, :n_ord].set(params["bo2"])
    b2 = b2.at[:, n_ord:n_ord + n_dis].set(params["bd2"])

    ti = _pick_i_tile(l, hf)
    n_tiles = l // ti
    rows = ti * l

    packed = pl.pallas_call(
        _edge_heads_kernel,
        out_shape=jax.ShapeDtypeStruct((b, l2, _C_PAD), jnp.float32),
        grid_spec=pltpu.PrefetchScalarGridSpec(
            num_scalar_prefetch=0,
            grid=(b, n_tiles),
            in_specs=[
                pl.BlockSpec((1, l, dd), lambda i, t: (i, 0, 0)),     # hid (j-side full)
                pl.BlockSpec((1, ti, dd), lambda i, t: (i, t, 0)),    # hid i-tile rows
                pl.BlockSpec((dd, hf), lambda i, t: (0, 0)),          # W1_top fused
                pl.BlockSpec((dd, hf), lambda i, t: (0, 0)),          # W1_bot fused
                pl.BlockSpec((1, hf), lambda i, t: (0, 0)),           # b1 fused
                pl.BlockSpec((hf, _C_PAD), lambda i, t: (0, 0)),      # W2 block-diagonal
                pl.BlockSpec((1, _C_PAD), lambda i, t: (0, 0)),       # b2 packed
            ],
            out_specs=pl.BlockSpec((1, rows, _C_PAD), lambda i, t: (i, t, 0)),
        ),
        compiler_params=pltpu.CompilerParams(
            dimension_semantics=("parallel", "parallel")),
    )(hid, hid, w1t, w1b, b1, w2, b2)

    out4 = packed.reshape(b, l, l, _C_PAD)
    order_logits = out4[..., :n_ord].transpose(0, 3, 1, 2)              # (B, 17, l, l)
    disp_logits = out4[..., n_ord:n_ord + n_dis].transpose(0, 3, 1, 2)  # (B, 15, l, l)
    return {"edge_orders": order_logits, "edge_displays": disp_logits}


def init_params(key, decoder_dim, order_cls_num=17, display_cls_num=15):
    dd = decoder_dim
    shapes = {
        "wo1": (2 * dd, dd), "bo1": (1, dd),
        "wo2": (dd, order_cls_num), "bo2": (1, order_cls_num),
        "wd1": (2 * dd, dd), "bd1": (1, dd),
        "wd2": (dd, display_cls_num), "bd2": (1, display_cls_num),
    }
    keys = jax.random.split(key, len(shapes))
    return {name: 0.05 * jax.random.normal(k, shp, jnp.float32)
            for k, (name, shp) in zip(keys, shapes.items())}


def _reference(hidden, params):
    """Pure-JAX reference mirroring the PyTorch forward (same tanh-GELU)."""
    hid = hidden[:, 3::3, :]
    b, l, dd = hid.shape
    hh = jnp.concatenate([
        jnp.broadcast_to(hid[:, :, None, :], (b, l, l, dd)),
        jnp.broadcast_to(hid[:, None, :, :], (b, l, l, dd)),
    ], axis=-1)

    def head(x, w1, b1, w2, b2):
        return _gelu(x @ w1 + b1) @ w2 + b2

    order = head(hh, params["wo1"], params["bo1"], params["wo2"], params["bo2"])
    disp = head(hh, params["wd1"], params["bd1"], params["wd2"], params["bd2"])
    return order.transpose(0, 3, 1, 2), disp.transpose(0, 3, 1, 2)


if __name__ == "__main__":
    key = jax.random.PRNGKey(0)
    encoder_dim, decoder_dim = 32, 16
    order_cls_num, display_cls_num = 17, 15
    b, c_tokens, l0 = 2, 16, 25          # selected l = len(range(3, 25, 3)) = 8

    k_img, k_hid, k_par = jax.random.split(key, 3)
    img_embed = jax.random.normal(k_img, (b, c_tokens, encoder_dim), jnp.float32)
    hidden = jax.random.normal(k_hid, (b, l0, decoder_dim), jnp.float32)
    params = init_params(k_par, decoder_dim, order_cls_num, display_cls_num)

    out = edge_info_img_predictor(img_embed, hidden, params)
    jax.block_until_ready(out)

    assert out["edge_orders"].shape == (b, order_cls_num, 8, 8)
    assert out["edge_displays"].shape == (b, display_cls_num, 8, 8)

    ref_order, ref_disp = _reference(hidden, params)
    err = max(float(jnp.max(jnp.abs(out["edge_orders"] - ref_order))),
              float(jnp.max(jnp.abs(out["edge_displays"] - ref_disp))))
    assert err < 1e-2, f"max abs diff vs reference: {err}"
    print("KERNEL_OK")
</pallas_src>

<mosaic_0001>
module attributes {stable_mosaic.version = 11 : i64} {
  func.func @_edge_heads_kernel(%arg0: i32, %arg1: i32, %arg2: memref<1x8x16xf32, #tpu.memory_space<vmem>>, %arg3: memref<1x8x16xf32, #tpu.memory_space<vmem>>, %arg4: memref<16x32xf32, #tpu.memory_space<vmem>>, %arg5: memref<16x32xf32, #tpu.memory_space<vmem>>, %arg6: memref<1x32xf32, #tpu.memory_space<vmem>>, %arg7: memref<32x128xf32, #tpu.memory_space<vmem>>, %arg8: memref<1x128xf32, #tpu.memory_space<vmem>>, %arg9: memref<1x64x128xf32, #tpu.memory_space<vmem>>) attributes {dimension_semantics = [#tpu.dimension_semantics<parallel>, #tpu.dimension_semantics<parallel>], iteration_bounds = array<i64: 2, 1>, scalar_prefetch = 0 : i64, scratch_operands = 0 : i64, tpu.core_type = #tpu.core_type<tc>, window_params = [{transform_indices = @transform_0, window_bounds = array<i64: 1, 8, 16>}, {transform_indices = @transform_1, window_bounds = array<i64: 1, 8, 16>}, {pipeline_mode = #tpu.pipeline_mode<synchronous>, transform_indices = @transform_2, window_bounds = array<i64: 16, 32>}, {pipeline_mode = #tpu.pipeline_mode<synchronous>, transform_indices = @transform_3, window_bounds = array<i64: 16, 32>}, {pipeline_mode = #tpu.pipeline_mode<synchronous>, transform_indices = @transform_4, window_bounds = array<i64: 1, 32>}, {pipeline_mode = #tpu.pipeline_mode<synchronous>, transform_indices = @transform_5, window_bounds = array<i64: 32, 128>}, {pipeline_mode = #tpu.pipeline_mode<synchronous>, transform_indices = @transform_6, window_bounds = array<i64: 1, 128>}, {transform_indices = @transform_7, window_bounds = array<i64: 1, 64, 128>}]} {
    %c0 = arith.constant 0 : index
    %c0_0 = arith.constant 0 : index
    %c0_1 = arith.constant 0 : index
    %0 = vector.load %arg2[%c0, %c0_0, %c0_1] : memref<1x8x16xf32, #tpu.memory_space<vmem>>, vector<1x8x16xf32>
    %1 = vector.shape_cast %0 : vector<1x8x16xf32> to vector<8x16xf32>
    %c0_2 = arith.constant 0 : index
    %c0_3 = arith.constant 0 : index
    %c0_4 = arith.constant 0 : index
    %2 = vector.load %arg3[%c0_2, %c0_3, %c0_4] : memref<1x8x16xf32, #tpu.memory_space<vmem>>, vector<1x8x16xf32>
    %3 = vector.shape_cast %2 : vector<1x8x16xf32> to vector<8x16xf32>
    %c0_5 = arith.constant 0 : index
    %c0_6 = arith.constant 0 : index
    %4 = vector.load %arg4[%c0_5, %c0_6] : memref<16x32xf32, #tpu.memory_space<vmem>>, vector<16x32xf32>
    %cst = arith.constant dense<0.000000e+00> : vector<8x32xf32>
    %5 = tpu.matmul %3, %4, %cst {dimension_numbers = #tpu.dot_dimension_numbers<[1], [0], [0], [1], [0, 0, 1, 1], [], []>} : vector<8x16xf32>, vector<16x32xf32>, vector<8x32xf32> -> vector<8x32xf32>
    %c0_7 = arith.constant 0 : index
    %c0_8 = arith.constant 0 : index
    %6 = vector.load %arg5[%c0_7, %c0_8] : memref<16x32xf32, #tpu.memory_space<vmem>>, vector<16x32xf32>
    %cst_9 = arith.constant dense<0.000000e+00> : vector<8x32xf32>
    %7 = tpu.matmul %1, %6, %cst_9 {dimension_numbers = #tpu.dot_dimension_numbers<[1], [0], [0], [1], [0, 0, 1, 1], [], []>} : vector<8x16xf32>, vector<16x32xf32>, vector<8x32xf32> -> vector<8x32xf32>
    %8 = vector.shape_cast %5 : vector<8x32xf32> to vector<8x1x32xf32>
    %9 = vector.shape_cast %7 : vector<8x32xf32> to vector<1x8x32xf32>
    %10 = vector.broadcast %8 : vector<8x1x32xf32> to vector<8x8x32xf32>
    %11 = vector.broadcast %9 : vector<1x8x32xf32> to vector<8x8x32xf32>
    %12 = arith.addf %10, %11 : vector<8x8x32xf32>
    %c0_10 = arith.constant 0 : index
    %c0_11 = arith.constant 0 : index
    %13 = vector.load %arg6[%c0_10, %c0_11] : memref<1x32xf32, #tpu.memory_space<vmem>>, vector<1x32xf32>
    %14 = vector.shape_cast %13 : vector<1x32xf32> to vector<1x1x32xf32>
    %15 = vector.broadcast %14 : vector<1x1x32xf32> to vector<8x8x32xf32>
    %16 = arith.addf %12, %15 : vector<8x8x32xf32>
    %cst_12 = arith.constant 0.636619746 : f32
    %17 = math.sqrt %cst_12 : f32
    %cst_13 = arith.constant 5.000000e-01 : f32
    %18 = vector.broadcast %cst_13 : f32 to vector<8x8x32xf32>
    %19 = arith.mulf %18, %16 : vector<8x8x32xf32>
    %20 = arith.mulf %16, %16 : vector<8x8x32xf32>
    %21 = arith.mulf %16, %20 : vector<8x8x32xf32>
    %cst_14 = arith.constant 4.471500e-02 : f32
    %22 = vector.broadcast %cst_14 : f32 to vector<8x8x32xf32>
    %23 = arith.mulf %22, %21 : vector<8x8x32xf32>
    %24 = arith.addf %16, %23 : vector<8x8x32xf32>
    %25 = vector.broadcast %17 : f32 to vector<8x8x32xf32>
    %26 = arith.mulf %25, %24 : vector<8x8x32xf32>
    %27 = math.tanh %26 : vector<8x8x32xf32>
    %cst_15 = arith.constant 1.000000e+00 : f32
    %28 = vector.broadcast %cst_15 : f32 to vector<8x8x32xf32>
    %29 = arith.addf %28, %27 : vector<8x8x32xf32>
    %30 = arith.mulf %19, %29 : vector<8x8x32xf32>
    %31 = vector.shape_cast %30 : vector<8x8x32xf32> to vector<64x32xf32>
    %c0_16 = arith.constant 0 : index
    %c0_17 = arith.constant 0 : index
    %32 = vector.load %arg7[%c0_16, %c0_17] : memref<32x128xf32, #tpu.memory_space<vmem>>, vector<32x128xf32>
    %cst_18 = arith.constant dense<0.000000e+00> : vector<64x128xf32>
    %33 = tpu.matmul %31, %32, %cst_18 {dimension_numbers = #tpu.dot_dimension_numbers<[1], [0], [0], [1], [0, 0, 1, 1], [], []>} : vector<64x32xf32>, vector<32x128xf32>, vector<64x128xf32> -> vector<64x128xf32>
    %c0_19 = arith.constant 0 : index
    %c0_20 = arith.constant 0 : index
    %34 = vector.load %arg8[%c0_19, %c0_20] : memref<1x128xf32, #tpu.memory_space<vmem>>, vector<1x128xf32>
    %35 = vector.broadcast %34 : vector<1x128xf32> to vector<64x128xf32>
    %36 = arith.addf %33, %35 : vector<64x128xf32>
    %c0_21 = arith.constant 0 : index
    %c0_22 = arith.constant 0 : index
    %c0_23 = arith.constant 0 : index
    %37 = vector.load %arg9[%c0_21, %c0_22, %c0_23] : memref<1x64x128xf32, #tpu.memory_space<vmem>>, vector<1x64x128xf32>
    %38 = vector.shape_cast %37 : vector<1x64x128xf32> to vector<64x128xf32>
    %39 = vector.shape_cast %36 : vector<64x128xf32> to vector<1x64x128xf32>
    tpu.vector_store %arg9[%c0_21, %c0_22, %c0_23], %39 {strides = array<i32>} : memref<1x64x128xf32, #tpu.memory_space<vmem>>, vector<1x64x128xf32>,
    return
  }
  func.func @transform_0(%arg0: i32, %arg1: i32) -> (i32, i32, i32) {
    %c0_i32 = arith.constant 0 : i32
    %c0_i32_0 = arith.constant 0 : i32
    %c0_i32_1 = arith.constant 0 : i32
    return %arg0, %c0_i32, %c0_i32_0 : i32, i32, i32
  }
  func.func @transform_1(%arg0: i32, %arg1: i32) -> (i32, i32, i32) {
    %c0_i32 = arith.constant 0 : i32
    %c0_i32_0 = arith.constant 0 : i32
    return %arg0, %arg1, %c0_i32 : i32, i32, i32
  }
  func.func @transform_2(%arg0: i32, %arg1: i32) -> (i32, i32) {
    %c0_i32 = arith.constant 0 : i32
    %c0_i32_0 = arith.constant 0 : i32
    %c0_i32_1 = arith.constant 0 : i32
    return %c0_i32, %c0_i32_0 : i32, i32
  }
  func.func @transform_3(%arg0: i32, %arg1: i32) -> (i32, i32) {
    %c0_i32 = arith.constant 0 : i32
    %c0_i32_0 = arith.constant 0 : i32
    %c0_i32_1 = arith.constant 0 : i32
    return %c0_i32, %c0_i32_0 : i32, i32
  }
  func.func @transform_4(%arg0: i32, %arg1: i32) -> (i32, i32) {
    %c0_i32 = arith.constant 0 : i32
    %c0_i32_0 = arith.constant 0 : i32
    %c0_i32_1 = arith.constant 0 : i32
    return %c0_i32, %c0_i32_0 : i32, i32
  }
  func.func @transform_5(%arg0: i32, %arg1: i32) -> (i32, i32) {
    %c0_i32 = arith.constant 0 : i32
    %c0_i32_0 = arith.constant 0 : i32
    %c0_i32_1 = arith.constant 0 : i32
    return %c0_i32, %c0_i32_0 : i32, i32
  }
  func.func @transform_6(%arg0: i32, %arg1: i32) -> (i32, i32) {
    %c0_i32 = arith.constant 0 : i32
    %c0_i32_0 = arith.constant 0 : i32
    %c0_i32_1 = arith.constant 0 : i32
    return %c0_i32, %c0_i32_0 : i32, i32
  }
  func.func @transform_7(%arg0: i32, %arg1: i32) -> (i32, i32, i32) {
    %c0_i32 = arith.constant 0 : i32
    %c0_i32_0 = arith.constant 0 : i32
    return %arg0, %arg1, %c0_i32 : i32, i32, i32
  }
}

</mosaic_0001>

<llo_original>
// kernel: tpu_custom_call.1
$region0: #{tpu_custom_call.1}
  #allocation0 [shape = 'u32[]', space=smem, size = 0x4, offset = 0x4, fixed_abs, tag = 'smem constant byte address 0x4 - core index']
  #allocation1 [shape = 'u32[144,128]{1,0:T(1,128)}', space=vmem, size = 0x12000, scoped, tag = 'internal scratch']
  %s0 = inlined_call_operand.hbm [shape: f32[2,8,16], index: 0, kind: input, shape index: {}]
  %s1 = inlined_call_operand.hbm [shape: f32[2,8,16], index: 1, kind: input, shape index: {}]
  %s2 = inlined_call_operand.hbm [shape: f32[16,32], index: 2, kind: input, shape index: {}]
  %s3 = inlined_call_operand.hbm [shape: f32[16,32], index: 3, kind: input, shape index: {}]
  %s4 = inlined_call_operand.vmem [shape: f32[1,32], index: 4, kind: input, shape index: {}]
  %s5 = inlined_call_operand.hbm [shape: f32[32,128], index: 5, kind: input, shape index: {}]
  %s6 = inlined_call_operand.vmem [shape: f32[1,128], index: 6, kind: input, shape index: {}]
  %s7 = inlined_call_operand.hbm [shape: f32[2,64,128], index: 7, kind: output, shape index: {}]
  %s8 = sld [smem:[#allocation0]]
  $region81: #{tpu_custom_call.1} parent=0
    _
  %s10 = ssub.s32 1, %s8
  %s11 = scalar_select 0, %s10, %s8
  $region1: #{tpu_custom_call.1} parent=0
    #allocation2 [shape = 'u8[8192]{0}', space=vmem, size = 0x2000, scoped, tag = 'input window, operand 0']
    #allocation3 [shape = 's32[2]{0}', space=sflag, size = 0x8, scoped, tag = 'scoped memory for tpu_custom_call.1']
    #allocation4 [shape = 's32[2]{0}', space=sflag, size = 0x8, scoped, tag = 'scoped memory for tpu_custom_call.1']
    #allocation5 [shape = 'u8[8192]{0}', space=vmem, size = 0x2000, scoped, tag = 'input window, operand 1']
    #allocation6 [shape = 's32[2]{0}', space=sflag, size = 0x8, scoped, tag = 'scoped memory for tpu_custom_call.1']
    #allocation7 [shape = 'u8[8192]{0}', space=vmem, size = 0x2000, scoped, tag = 'input window, operand 2, single buffered']
    #allocation8 [shape = 'u8[8192]{0}', space=vmem, size = 0x2000, scoped, tag = 'input window, operand 3, single buffered']
    #allocation9 [shape = 's32[1]{0}', space=sflag, size = 0x4, scoped, tag = 'scoped memory for tpu_custom_call.1']
    #allocation10 [shape = 'u8[16384]{0}', space=vmem, size = 0x4000, scoped, tag = 'input window, operand 5, single buffered']
    #allocation11 [shape = 'u8[65536]{0}', space=vmem, size = 0x10000, scoped, tag = 'output window, operand 0']
    %12 = vsyncpa [#allocation3], 0
    %s13 = scalar_lea.sflag [#allocation3], 1
    %14 = vsyncpa %s13, 0
    %15 = vsyncpa [#allocation6], 0
    %s16 = scalar_lea.sflag [#allocation6], 1
    %17 = vsyncpa %s16, 0
    %18 = vsyncpa [#allocation9], 0
    %19 = vsyncpa [#allocation4], 0
    %s20 = scalar_lea.sflag [#allocation4], 1
    %21 = vsyncpa %s20, 0
    loop: start=0, step=1, limit=4
    $region2: #{tpu_custom_call.1} parent=1 // loop_pre_header
      _
    $region3: #{tpu_custom_call.1} parent=1 // loop_header
      %s23 = sphi 0, %s27
      %p24 = scmp.ge.s32.totalorder %s23, 4
      %s30 = sphi 0, %s42
      %s31 = sphi 0, %s38
      %s32 = sphi 0, %s30
      %s33 = sphi 0, %s31
      %s34 = sphi 0, %s32
      %s35 = sphi 0, %s33
      %s45 = sphi 0, %s47
      %s48 = sphi 0, %s45
      %s49 = sphi 0, %s48
      %s65 = sphi 0, %s49
      %s73 = sphi 0, %s75
      %s76 = sphi 0, %s73
      %s77 = sphi 0, %s76
      %s93 = sphi 0, %s77
      %s97 = sphi 0, %s97
      %s99 = sphi 0, %s97
      %s100 = sphi 0, %s99
      %s114 = sphi 0, %s100
      %s118 = sphi 0, %s118
      %s120 = sphi 0, %s118
      %s121 = sphi 0, %s120
      %s135 = sphi 0, %s121
      %s139 = sphi 0, %s139
      %s141 = sphi 0, %s139
      %s142 = sphi 0, %s141
      %s156 = sphi 0, %s142
      %s160 = sphi 0, %s160
      %s162 = sphi 0, %s160
      %s163 = sphi 0, %s162
      %s177 = sphi 0, %s163
      %s181 = sphi 0, %s181
      %s183 = sphi 0, %s181
      %s184 = sphi 0, %s183
      %s198 = sphi 0, %s184
      %s206 = sphi 0, %s208
      %s209 = sphi 0, %s206
      %s210 = sphi 0, %s209
      %s226 = sphi 0, %s210
    $region4: #{tpu_custom_call.1} parent=1 // loop_header_branch
      %26 = sbr.rel (%p24) target = $region8
    $region5: #{tpu_custom_call.1} parent=1 // loop_body
      %s28 = ssub.s32 %s23, 1
      %s29 = ssub.s32 %s23, 2
      %s36 = sadd.s32 1, %s31
      %p37 = scmp.ge.s32.totalorder %s36, 1
      %s38 = scalar_select %p37, 0, %s36
      %s39 = sadd.s32 1, %s30
      %s40 = scalar_select %p37, %s39, %s30
      %p41 = scmp.ge.s32.totalorder %s40, 2
      %s42 = scalar_select %p41, 0, %s40
      %s43 = ssub.s32 %s30, %s42
      %p44 = scmp.eq.s32.totalorder %s43, 0
      %s46 = sadd.s32 %s45, 1
      %s47 = scalar_select %p44, %s45, %s46
      %p50 = pneg %p44
      %p51 = scmp.eq.s32.totalorder %s23, 1
      %p52 = por %p50, %p51
      %p53 = scmp.ne.s32.totalorder %s45, %s48
      %p54 = scmp.eq.s32.totalorder %s23, 0
      %p55 = por %p53, %p54
      %p56 = scmp.ne.s32.totalorder %s45, %s48
      %p57 = scmp.eq.s32.totalorder %s28, 1
      %p58 = por %p56, %p57
      %p59 = scmp.ne.s32.totalorder %s48, %s49
      %p60 = scmp.eq.s32.totalorder %s28, 0
      %p61 = por %p59, %p60
      %p62 = scmp.ne.s32.totalorder %s48, %s49
      %p63 = scmp.eq.s32.totalorder %s29, 1
      %p64 = por %p62, %p63
      %p66 = scmp.ne.s32.totalorder %s49, %s65
      %p67 = scmp.eq.s32.totalorder %s29, 0
      %p68 = por %p66, %p67
      %s69 = ssub.s32 %s30, %s42
      %s70 = ssub.s32 %s31, %s38
      %s71 = sor.u32 %s69, %s70
      %p72 = scmp.eq.s32.totalorder %s71, 0
      %s74 = sadd.s32 %s73, 1
      %s75 = scalar_select %p72, %s73, %s74
      %p78 = pneg %p72
      %p79 = scmp.eq.s32.totalorder %s23, 1
      %p80 = por %p78, %p79
      %p81 = scmp.ne.s32.totalorder %s73, %s76
      %p82 = scmp.eq.s32.totalorder %s23, 0
      %p83 = por %p81, %p82
      %p84 = scmp.ne.s32.totalorder %s73, %s76
      %p85 = scmp.eq.s32.totalorder %s28, 1
      %p86 = por %p84, %p85
      %p87 = scmp.ne.s32.totalorder %s76, %s77
      %p88 = scmp.eq.s32.totalorder %s28, 0
      %p89 = por %p87, %p88
      %p90 = scmp.ne.s32.totalorder %s76, %s77
      %p91 = scmp.eq.s32.totalorder %s29, 1
      %p92 = por %p90, %p91
      %p94 = scmp.ne.s32.totalorder %s77, %s93
      %p95 = scmp.eq.s32.totalorder %s29, 0
      %p96 = por %p94, %p95
      %s98 = sadd.s32 %s97, 1
      %p101 = scmp.eq.s32.totalorder %s23, 1
      %p102 = scmp.ne.s32.totalorder %s97, %s99
      %p103 = scmp.eq.s32.totalorder %s23, 0
      %p104 = por %p102, %p103
      %p105 = scmp.ne.s32.totalorder %s97, %s99
      %p106 = scmp.eq.s32.totalorder %s28, 1
      %p107 = por %p105, %p106
      %p108 = scmp.ne.s32.totalorder %s99, %s100
      %p109 = scmp.eq.s32.totalorder %s28, 0
      %p110 = por %p108, %p109
      %p111 = scmp.ne.s32.totalorder %s99, %s100
      %p112 = scmp.eq.s32.totalorder %s29, 1
      %p113 = por %p111, %p112
      %p115 = scmp.ne.s32.totalorder %s100, %s114
      %p116 = scmp.eq.s32.totalorder %s29, 0
      %p117 = por %p115, %p116
      %s119 = sadd.s32 %s118, 1
      %p122 = scmp.eq.s32.totalorder %s23, 1
      %p123 = scmp.ne.s32.totalorder %s118, %s120
      %p124 = scmp.eq.s32.totalorder %s23, 0
      %p125 = por %p123, %p124
      %p126 = scmp.ne.s32.totalorder %s118, %s120
      %p127 = scmp.eq.s32.totalorder %s28, 1
      %p128 = por %p126, %p127
      %p129 = scmp.ne.s32.totalorder %s120, %s121
      %p130 = scmp.eq.s32.totalorder %s28, 0
      %p131 = por %p129, %p130
      %p132 = scmp.ne.s32.totalorder %s120, %s121
      %p133 = scmp.eq.s32.totalorder %s29, 1
      %p134 = por %p132, %p133
      %p136 = scmp.ne.s32.totalorder %s121, %s135
      %p137 = scmp.eq.s32.totalorder %s29, 0
      %p138 = por %p136, %p137
      %s140 = sadd.s32 %s139, 1
      %p143 = scmp.eq.s32.totalorder %s23, 1
      %p144 = scmp.ne.s32.totalorder %s139, %s141
      %p145 = scmp.eq.s32.totalorder %s23, 0
      %p146 = por %p144, %p145
      %p147 = scmp.ne.s32.totalorder %s139, %s141
      %p148 = scmp.eq.s32.totalorder %s28, 1
      %p149 = por %p147, %p148
      %p150 = scmp.ne.s32.totalorder %s141, %s142
      %p151 = scmp.eq.s32.totalorder %s28, 0
      %p152 = por %p150, %p151
      %p153 = scmp.ne.s32.totalorder %s141, %s142
      %p154 = scmp.eq.s32.totalorder %s29, 1
      %p155 = por %p153, %p154
      %p157 = scmp.ne.s32.totalorder %s142, %s156
      %p158 = scmp.eq.s32.totalorder %s29, 0
      %p159 = por %p157, %p158
      %s161 = sadd.s32 %s160, 1
      %p164 = scmp.eq.s32.totalorder %s23, 1
      %p165 = scmp.ne.s32.totalorder %s160, %s162
      %p166 = scmp.eq.s32.totalorder %s23, 0
      %p167 = por %p165, %p166
      %p168 = scmp.ne.s32.totalorder %s160, %s162
      %p169 = scmp.eq.s32.totalorder %s28, 1
      %p170 = por %p168, %p169
      %p171 = scmp.ne.s32.totalorder %s162, %s163
      %p172 = scmp.eq.s32.totalorder %s28, 0
      %p173 = por %p171, %p172
      %p174 = scmp.ne.s32.totalorder %s162, %s163
      %p175 = scmp.eq.s32.totalorder %s29, 1
      %p176 = por %p174, %p175
      %p178 = scmp.ne.s32.totalorder %s163, %s177
      %p179 = scmp.eq.s32.totalorder %s29, 0
      %p180 = por %p178, %p179
      %s182 = sadd.s32 %s181, 1
      %p185 = scmp.eq.s32.totalorder %s23, 1
      %p186 = scmp.ne.s32.totalorder %s181, %s183
      %p187 = scmp.eq.s32.totalorder %s23, 0
      %p188 = por %p186, %p187
      %p189 = scmp.ne.s32.totalorder %s181, %s183
      %p190 = scmp.eq.s32.totalorder %s28, 1
      %p191 = por %p189, %p190
      %p192 = scmp.ne.s32.totalorder %s183, %s184
      %p193 = scmp.eq.s32.totalorder %s28, 0
      %p194 = por %p192, %p193
      %p195 = scmp.ne.s32.totalorder %s183, %s184
      %p196 = scmp.eq.s32.totalorder %s29, 1
      %p197 = por %p195, %p196
      %p199 = scmp.ne.s32.totalorder %s184, %s198
      %p200 = scmp.eq.s32.totalorder %s29, 0
      %p201 = por %p199, %p200
      %s202 = ssub.s32 %s30, %s42
      %s203 = ssub.s32 %s31, %s38
      %s204 = sor.u32 %s202, %s203
      %p205 = scmp.eq.s32.totalorder %s204, 0
      %s207 = sadd.s32 %s206, 1
      %s208 = scalar_select %p205, %s206, %s207
      %p211 = pneg %p205
      %p212 = scmp.eq.s32.totalorder %s23, 1
      %p213 = por %p211, %p212
      %p214 = scmp.ne.s32.totalorder %s206, %s209
      %p215 = scmp.eq.s32.totalorder %s23, 0
      %p216 = por %p214, %p215
      %p217 = scmp.ne.s32.totalorder %s206, %s209
      %p218 = scmp.eq.s32.totalorder %s28, 1
      %p219 = por %p217, %p218
      %p220 = scmp.ne.s32.totalorder %s209, %s210
      %p221 = scmp.eq.s32.totalorder %s28, 0
      %p222 = por %p220, %p221
      %p223 = scmp.ne.s32.totalorder %s209, %s210
      %p224 = scmp.eq.s32.totalorder %s29, 1
      %p225 = por %p223, %p224
      %p227 = scmp.ne.s32.totalorder %s210, %s226
      %p228 = scmp.eq.s32.totalorder %s29, 0
      %p229 = por %p227, %p228
      %p230 = scmp.le.s32.totalorder 1, %s23
      %p231 = scmp.lt.s32.totalorder %s23, 3
      %p232 = pnand %p230, %p231
      %p233 = pneg %p232
      // Predicated region
      $region9: #{tpu_custom_call.1} parent=5 // pred_check
        _
      $region10: #{tpu_custom_call.1} parent=5 // pred_check_branch
        %235 = sbr.rel (%p232) target = $region12
      $region11: #{tpu_custom_call.1} parent=5 // pred_region
        %s236 = ssub.s32 %s23, 1
        // Predicated region
        $region13: #{tpu_custom_call.1} parent=11 // pred_check
          %p237 = pneg %p110
        $region14: #{tpu_custom_call.1} parent=11 // pred_check_branch
          %239 = sbr.rel (%p237) target = $region16
        $region15: #{tpu_custom_call.1} parent=11 // pred_region
          %s241 = ssub.s32 256, 256
          %242 = vsyncadd [#allocation6], %s241
          %s243 = sshll.u32 [#allocation7], 4
          %s244 = int_to_ptr.vmem [resolvable:$true] %s243
          %249 = dma.hbm_to_vmem [thread:$0]  %s2, 256, %s244, [#allocation6], 128, 128, 8
        $region16: #{tpu_custom_call.1} parent=11 // pred_fallthru
          _
        // Predicated region
        $region17: #{tpu_custom_call.1} parent=11 // pred_check
          %p250 = pneg %p131
        $region18: #{tpu_custom_call.1} parent=11 // pred_check_branch
          %252 = sbr.rel (%p250) target = $region20
        $region19: #{tpu_custom_call.1} parent=11 // pred_region
          %s254 = ssub.s32 256, 256
          %255 = vsyncadd [#allocation9], %s254
          %s256 = sshll.u32 [#allocation8], 4
          %s257 = int_to_ptr.vmem [resolvable:$true] %s256
          %262 = dma.hbm_to_vmem [thread:$0]  %s3, 256, %s257, [#allocation9], 128, 128, 8
        $region20: #{tpu_custom_call.1} parent=11 // pred_fallthru
          _
        // Predicated region
        $region21: #{tpu_custom_call.1} parent=11 // pred_check
          %p263 = pneg %p152
        $region22: #{tpu_custom_call.1} parent=11 // pred_check_branch
          %265 = sbr.rel (%p263) target = $region24
        $region23: #{tpu_custom_call.1} parent=11 // pred_region
          _
        $region24: #{tpu_custom_call.1} parent=11 // pred_fallthru
          _
        // Predicated region
        $region25: #{tpu_custom_call.1} parent=11 // pred_check
          %p266 = pneg %p173
        $region26: #{tpu_custom_call.1} parent=11 // pred_check_branch
          %268 = sbr.rel (%p266) target = $region28
        $region27: #{tpu_custom_call.1} parent=11 // pred_region
          %s270 = ssub.s32 512, 512
          %271 = vsyncadd [#allocation9], %s270
          %s272 = sshll.u32 [#allocation10], 4
          %s273 = int_to_ptr.vmem [resolvable:$true] %s272
          %278 = dma.hbm_to_vmem [thread:$0]  %s5, 512, %s273, [#allocation9], 128, 128, 8
        $region28: #{tpu_custom_call.1} parent=11 // pred_fallthru
          _
        // Predicated region
        $region29: #{tpu_custom_call.1} parent=11 // pred_check
          %p279 = pneg %p194
        $region30: #{tpu_custom_call.1} parent=11 // pred_check_branch
          %281 = sbr.rel (%p279) target = $region32
        $region31: #{tpu_custom_call.1} parent=11 // pred_region
          _
        $region32: #{tpu_custom_call.1} parent=11 // pred_fallthru
          _
      $region12: #{tpu_custom_call.1} parent=5 // pred_fallthru
        _
      %p282 = scmp.lt.s32.totalorder %s23, 2
      // Predicated region
      $region33: #{tpu_custom_call.1} parent=5 // pred_check
        %p283 = pneg %p282
      $region34: #{tpu_custom_call.1} parent=5 // pred_check_branch
        %285 = sbr.rel (%p283) target = $region36
      $region35: #{tpu_custom_call.1} parent=5 // pred_region
        // Predicated region
        $region37: #{tpu_custom_call.1} parent=35 // pred_check
          %p286 = pneg %p55
        $region38: #{tpu_custom_call.1} parent=35 // pred_check_branch
          %288 = sbr.rel (%p286) target = $region40
        $region39: #{tpu_custom_call.1} parent=35 // pred_region
          %s289 = sand.u32 %s45, 1
          %s290 = scalar_lea.sflag [#allocation3], %s289
          %s291 = sand.u32 %s45, 1
          %s292 = smul.addr %s291, 8
          %s293 = scalar_lea.vmem [#allocation2], %s292
          %s295 = ssub.s32 128, 128
          %296 = vsyncadd %s290, %s295
          %s297 = smul.addr %s30, 128
          %s298 = scalar_lea.hbm %s0, %s297
          %s300 = sshll.u32 %s293, 4
          %s301 = int_to_ptr.vmem [resolvable:$true] %s300
          %303 = dma.hbm_to_vmem [thread:$0]  %s298, 128, %s301, %s290
        $region40: #{tpu_custom_call.1} parent=35 // pred_fallthru
          _
        // Predicated region
        $region41: #{tpu_custom_call.1} parent=35 // pred_check
          %p304 = pneg %p83
        $region42: #{tpu_custom_call.1} parent=35 // pred_check_branch
          %306 = sbr.rel (%p304) target = $region44
        $region43: #{tpu_custom_call.1} parent=35 // pred_region
          %s307 = sand.u32 %s23, 1
          %s308 = scalar_lea.sflag [#allocation6], %s307
          %s309 = sand.u32 %s73, 1
          %s310 = smul.addr %s309, 8
          %s311 = scalar_lea.vmem [#allocation5], %s310
          %s313 = ssub.s32 128, 128
          %314 = vsyncadd %s308, %s313
          %s315 = sadd.s32 %s31, %s30
          %s316 = smul.addr %s315, 128
          %s317 = scalar_lea.hbm %s1, %s316
          %s319 = sshll.u32 %s311, 4
          %s320 = int_to_ptr.vmem [resolvable:$true] %s319
          %322 = dma.hbm_to_vmem [thread:$0]  %s317, 128, %s320, %s308
        $region44: #{tpu_custom_call.1} parent=35 // pred_fallthru
          _
      $region36: #{tpu_custom_call.1} parent=5 // pred_fallthru
        _
      %p323 = scmp.le.s32.totalorder 1, %s23
      %p324 = scmp.lt.s32.totalorder %s23, 3
      %p325 = pnand %p323, %p324
      %p326 = pneg %p325
      // Predicated region
      $region45: #{tpu_custom_call.1} parent=5 // pred_check
        _
      $region46: #{tpu_custom_call.1} parent=5 // pred_check_branch
        %328 = sbr.rel (%p325) target = $region48
      $region47: #{tpu_custom_call.1} parent=5 // pred_region
        %s329 = ssub.s32 %s23, 1
        %s330 = sand.u32 %s48, 1
        %s331 = scalar_lea.sflag [#allocation3], %s330
        %s332 = sand.u32 %s48, 1
        %s333 = smul.addr %s332, 8
        %s334 = scalar_lea.vmem [#allocation2], %s333
        // Predicated region
        $region49: #{tpu_custom_call.1} parent=47 // pred_check
          %p335 = pneg %p61
        $region50: #{tpu_custom_call.1} parent=47 // pred_check_branch
          %337 = sbr.rel (%p335) target = $region52
        $region51: #{tpu_custom_call.1} parent=47 // pred_region
          %338 = dma.done %s331, 128
        $region52: #{tpu_custom_call.1} parent=47 // pred_fallthru
          _
        %s339 = sand.u32 %s28, 1
        %s340 = scalar_lea.sflag [#allocation6], %s339
        %s341 = sand.u32 %s76, 1
        %s342 = smul.addr %s341, 8
        %s343 = scalar_lea.vmem [#allocation5], %s342
        // Predicated region
        $region53: #{tpu_custom_call.1} parent=47 // pred_check
          %p344 = pneg %p89
        $region54: #{tpu_custom_call.1} parent=47 // pred_check_branch
          %346 = sbr.rel (%p344) target = $region56
        $region55: #{tpu_custom_call.1} parent=47 // pred_region
          %347 = dma.done %s340, 128
        $region56: #{tpu_custom_call.1} parent=47 // pred_fallthru
          _
        // Predicated region
        $region57: #{tpu_custom_call.1} parent=47 // pred_check
          %p348 = pneg %p110
        $region58: #{tpu_custom_call.1} parent=47 // pred_check_branch
          %350 = sbr.rel (%p348) target = $region60
        $region59: #{tpu_custom_call.1} parent=47 // pred_region
          %351 = dma.done [#allocation6], 256
        $region60: #{tpu_custom_call.1} parent=47 // pred_fallthru
          _
        // Predicated region
        $region61: #{tpu_custom_call.1} parent=47 // pred_check
          %p352 = pneg %p131
        $region62: #{tpu_custom_call.1} parent=47 // pred_check_branch
          %354 = sbr.rel (%p352) target = $region64
        $region63: #{tpu_custom_call.1} parent=47 // pred_region
          %355 = dma.done [#allocation9], 256
        $region64: #{tpu_custom_call.1} parent=47 // pred_fallthru
          _
        // Predicated region
        $region65: #{tpu_custom_call.1} parent=47 // pred_check
          %p356 = pneg %p173
        $region66: #{tpu_custom_call.1} parent=47 // pred_check_branch
          %358 = sbr.rel (%p356) target = $region68
        $region67: #{tpu_custom_call.1} parent=47 // pred_region
          %359 = dma.done [#allocation9], 512
        $region68: #{tpu_custom_call.1} parent=47 // pred_fallthru
          _
        %s360 = sand.u32 %s48, 1
        %s361 = scalar_lea.sflag [#allocation3], %s360
        %s362 = sand.u32 %s48, 1
        %s363 = smul.addr %s362, 8
        %s364 = scalar_lea.vmem [#allocation2], %s363
        %p365 = pneg %p61
        %p366 = pneg %p58
        %s367 = sand.u32 %s28, 1
        %s368 = scalar_lea.sflag [#allocation6], %s367
        %s369 = sand.u32 %s76, 1
        %s370 = smul.addr %s369, 8
        %s371 = scalar_lea.vmem [#allocation5], %s370
        %p372 = pneg %p89
        %p373 = pneg %p86
        %p374 = pneg %p110
        %p375 = pneg %p107
        %p376 = pneg %p131
        %p377 = pneg %p128
        %p378 = pneg %p152
        %p379 = pneg %p149
        %p380 = pneg %p173
        %p381 = pneg %p170
        %p382 = pneg %p194
        %p383 = pneg %p191
        %p384 = pneg %p222
        %p385 = pneg %p219
        %s386 = sand.u32 %s209, 1
        %s387 = scalar_lea.sflag [#allocation4], %s386
        %s388 = sand.u32 %s209, 1
        %s389 = smul.addr %s388, 64
        %s390 = scalar_lea.vmem [#allocation11], %s389
        %s391 = smul.u32 8, %s33
        %v392 = vld [vmem:[%s334] sm:$0xff]
        %v393 = vld [vmem:[%s343] sm:$0xff]
        %v394 = vld [vmem:[#allocation7] sm:$0xff]
        %v395 = vld [vmem:[#allocation7 + $0x8] sm:$0xff]
        %vm396 = vcmask 130048
        %v398 = vsel %vm396, %v393, 0
        %400 = vmatprep.subr.mxu0 0.0
        %401 = vmatpush1.msra.mxu0 0.0
        %402 = vmatprep.subr.mxu0 0.0
        %403 = vmatpush1.msra.mxu0 0.0
        %404 = vmatprep.subr.mxu0 0.0
        %405 = vmatpush1.msra.mxu0 0.0
        %406 = vmatprep.subr.mxu0 0.0
        %407 = vmatpush1.msra.mxu0 0.0
        %408 = vmatprep.subr.mxu0 0.0
        %409 = vmatpush1.msra.mxu0 0.0
        %410 = vmatprep.subr.mxu0 0.0
        %411 = vmatpush1.msra.mxu0 0.0
        %412 = vmatprep.subr.mxu0 0.0
        %413 = vmatpush1.msra.mxu0 0.0
        %414 = vmatprep.subr.mxu0 0.0
        %415 = vmatpush1.msra.mxu0 0.0
        %416 = vmatprep.subr.mxu0 0.0
        %417 = vmatpush1.msra.mxu0 0.0
        %418 = vmatprep.subr.mxu0 0.0
        %419 = vmatpush1.msra.mxu0 0.0
        %420 = vmatprep.subr.mxu0 0.0
        %421 = vmatpush1.msra.mxu0 0.0
        %422 = vmatprep.subr.mxu0 0.0
        %423 = vmatpush1.msra.mxu0 0.0
        %424 = vmatprep.subr.mxu0 0.0
        %425 = vmatpush1.msra.mxu0 0.0
        %426 = vmatprep.subr.mxu0 0.0
        %427 = vmatpush1.msra.mxu0 0.0
        %428 = vmatprep.subr.mxu0 0.0
        %429 = vmatpush1.msra.mxu0 %v395
        %430 = vmatprep.subr.mxu0 0.0
        %431 = vmatpush1.msra.mxu0 %v394
        %432 = vmatprep.subr.mxu0 0.0
        %433 = vmatpush2.msra.mxu0 0.0
        %434 = vmatprep.subr.mxu0 0.0
        %435 = vmatpush2.msra.mxu0 0.0
        %436 = vmatprep.subr.mxu0 0.0
        %437 = vmatpush2.msra.mxu0 0.0
        %438 = vmatprep.subr.mxu0 0.0
        %439 = vmatpush2.msra.mxu0 0.0
        %440 = vmatprep.subr.mxu0 0.0
        %441 = vmatpush2.msra.mxu0 0.0
        %442 = vmatprep.subr.mxu0 0.0
        %443 = vmatpush2.msra.mxu0 0.0
        %444 = vmatprep.subr.mxu0 0.0
        %445 = vmatpush2.msra.mxu0 0.0
        %446 = vmatprep.subr.mxu0 0.0
        %447 = vmatpush2.msra.mxu0 0.0
        %448 = vmatprep.subr.mxu0 0.0
        %449 = vmatpush2.msra.mxu0 0.0
        %450 = vmatprep.subr.mxu0 0.0
        %451 = vmatpush2.msra.mxu0 0.0
        %452 = vmatprep.subr.mxu0 0.0
        %453 = vmatpush2.msra.mxu0 0.0
        %454 = vmatprep.subr.mxu0 0.0
        %455 = vmatpush2.msra.mxu0 0.0
        %456 = vmatprep.subr.mxu0 0.0
        %457 = vmatpush2.msra.mxu0 0.0
        %458 = vmatprep.subr.mxu0 0.0
        %459 = vmatpush2.msra.mxu0 0.0
        %460 = vmatprep.subr.mxu0 0.0
        %461 = vmatpush2.msra.mxu0 0.0
        %462 = vmatprep.subr.mxu0 0.0
        %463 = vmatpush2.msra.mxu0 0.0
        %464 = vmatprep.mubr.f32.mxu0 0.0
        %465 = vmatmul.mubr.f32.gmra.mxu0 %v398
        %v466 = vpop.f32.mrf.mxu0
        %v467 = vadd.f32 0.0, %v466
        %v468 = vpop.f32.mrf.mxu0
        %469 = vdwg.mxu0
        %v470 = vld [vmem:[#allocation8] sm:$0xff]
        %v471 = vld [vmem:[#allocation8 + $0x8] sm:$0xff]
        %v473 = vsel %vm396, %v392, 0
        %475 = vmatprep.subr.mxu0 0.0
        %476 = vmatpush1.msra.mxu0 0.0
        %477 = vmatprep.subr.mxu0 0.0
        %478 = vmatpush1.msra.mxu0 0.0
        %479 = vmatprep.subr.mxu0 0.0
        %480 = vmatpush1.msra.mxu0 0.0
        %481 = vmatprep.subr.mxu0 0.0
        %482 = vmatpush1.msra.mxu0 0.0
        %483 = vmatprep.subr.mxu0 0.0
        %484 = vmatpush1.msra.mxu0 0.0
        %485 = vmatprep.subr.mxu0 0.0
        %486 = vmatpush1.msra.mxu0 0.0
        %487 = vmatprep.subr.mxu0 0.0
        %488 = vmatpush1.msra.mxu0 0.0
        %489 = vmatprep.subr.mxu0 0.0
        %490 = vmatpush1.msra.mxu0 0.0
        %491 = vmatprep.subr.mxu0 0.0
        %492 = vmatpush1.msra.mxu0 0.0
        %493 = vmatprep.subr.mxu0 0.0
        %494 = vmatpush1.msra.mxu0 0.0
        %495 = vmatprep.subr.mxu0 0.0
        %496 = vmatpush1.msra.mxu0 0.0
        %497 = vmatprep.subr.mxu0 0.0
        %498 = vmatpush1.msra.mxu0 0.0
        %499 = vmatprep.subr.mxu0 0.0
        %500 = vmatpush1.msra.mxu0 0.0
        %501 = vmatprep.subr.mxu0 0.0
        %502 = vmatpush1.msra.mxu0 0.0
        %503 = vmatprep.subr.mxu0 0.0
        %504 = vmatpush1.msra.mxu0 %v471
        %505 = vmatprep.subr.mxu0 0.0
        %506 = vmatpush1.msra.mxu0 %v470
        %507 = vmatprep.subr.mxu0 0.0
        %508 = vmatpush2.msra.mxu0 0.0
        %509 = vmatprep.subr.mxu0 0.0
        %510 = vmatpush2.msra.mxu0 0.0
        %511 = vmatprep.subr.mxu0 0.0
        %512 = vmatpush2.msra.mxu0 0.0
        %513 = vmatprep.subr.mxu0 0.0
        %514 = vmatpush2.msra.mxu0 0.0
        %515 = vmatprep.subr.mxu0 0.0
        %516 = vmatpush2.msra.mxu0 0.0
        %517 = vmatprep.subr.mxu0 0.0
        %518 = vmatpush2.msra.mxu0 0.0
        %519 = vmatprep.subr.mxu0 0.0
        %520 = vmatpush2.msra.mxu0 0.0
        %521 = vmatprep.subr.mxu0 0.0
        %522 = vmatpush2.msra.mxu0 0.0
        %523 = vmatprep.subr.mxu0 0.0
        %524 = vmatpush2.msra.mxu0 0.0
        %525 = vmatprep.subr.mxu0 0.0
        %526 = vmatpush2.msra.mxu0 0.0
        %527 = vmatprep.subr.mxu0 0.0
        %528 = vmatpush2.msra.mxu0 0.0
        %529 = vmatprep.subr.mxu0 0.0
        %530 = vmatpush2.msra.mxu0 0.0
        %531 = vmatprep.subr.mxu0 0.0
        %532 = vmatpush2.msra.mxu0 0.0
        %533 = vmatprep.subr.mxu0 0.0
        %534 = vmatpush2.msra.mxu0 0.0
        %535 = vmatprep.subr.mxu0 0.0
        %536 = vmatpush2.msra.mxu0 0.0
        %537 = vmatprep.subr.mxu0 0.0
        %538 = vmatpush2.msra.mxu0 0.0
        %539 = vmatprep.mubr.f32.mxu0 0.0
        %540 = vmatmul.mubr.f32.gmra.mxu0 %v473
        %v541 = vpop.f32.mrf.mxu0
        %v542 = vadd.f32 0.0, %v541
        %v543 = vpop.f32.mrf.mxu0
        %544 = vdwg.mxu0
        %v546 = vcombine.high %v467, %v467
        %v548 = vunpack.c.l.s4 1966171168
        %v549 = vunpack.c.0.s8 %v548
        %v550 = vlaneseq
        %v551 = vshrl.u32 %v550, 7
        %v552 = vsub.s32 %v549, %v551
        %v553 = vrot.slane %v467, %v552
        %v555 = vunpack.c.l.s4 1966171168
        %v556 = vunpack.c.0.s8 %v555
        %v557 = vlaneseq
        %v558 = vshrl.u32 %v557, 7
        %v559 = vsub.s32 %v556, %v558
        %v560 = vrot.slane %v546, %v559
        %v561 = vcombine.high %v553, %v553
        %v562 = vcombine.high %v560, %v560
        %v564 = vunpack.c.l.s4 1966171168
        %v565 = vunpack.c.0.s8 %v564
        %v566 = vlaneseq
        %v567 = vshrl.u32 %v566, 7
        %v568 = vsub.s32 %v565, %v567
        %v569 = vrot.slane %v553, %v568
        %v571 = vunpack.c.l.s4 1966171168
        %v572 = vunpack.c.0.s8 %v571
        %v573 = vlaneseq
        %v574 = vshrl.u32 %v573, 7
        %v575 = vsub.s32 %v572, %v574
        %v576 = vrot.slane %v560, %v575
        %v578 = vunpack.c.l.s4 1966171168
        %v579 = vunpack.c.0.s8 %v578
        %v580 = vlaneseq
        %v581 = vshrl.u32 %v580, 7
        %v582 = vsub.s32 %v579, %v581
        %v583 = vrot.slane %v561, %v582
        %v585 = vunpack.c.l.s4 1966171168
        %v586 = vunpack.c.0.s8 %v585
        %v587 = vlaneseq
        %v588 = vshrl.u32 %v587, 7
        %v589 = vsub.s32 %v586, %v588
        %v590 = vrot.slane %v562, %v589
        %v591 = vcombine.high %v569, %v569
        %v592 = vcombine.high %v576, %v576
        %v593 = vcombine.high %v583, %v583
        %v594 = vcombine.high %v590, %v590
        %v595 = vlaneseq
        %v596 = vshrl.u32 %v595, 7
        %v597 = vsub.s32 0, %v596
        %v598 = vrot.slane %v569, %v597
        %v599 = vlaneseq
        %v600 = vshrl.u32 %v599, 7
        %v601 = vsub.s32 0, %v600
        %v602 = vrot.slane %v583, %v601
        %v603 = vlaneseq
        %v604 = vshrl.u32 %v603, 7
        %v605 = vsub.s32 0, %v604
        %v606 = vrot.slane %v591, %v605
        %v607 = vlaneseq
        %v608 = vshrl.u32 %v607, 7
        %v609 = vsub.s32 0, %v608
        %v610 = vrot.slane %v593, %v609
        %v611 = vlaneseq
        %v612 = vshrl.u32 %v611, 7
        %v613 = vsub.s32 0, %v612
        %v614 = vrot.slane %v576, %v613
        %v615 = vlaneseq
        %v616 = vshrl.u32 %v615, 7
        %v617 = vsub.s32 0, %v616
        %v618 = vrot.slane %v590, %v617
        %v619 = vlaneseq
        %v620 = vshrl.u32 %v619, 7
        %v621 = vsub.s32 0, %v620
        %v622 = vrot.slane %v592, %v621
        %v623 = vlaneseq
        %v624 = vshrl.u32 %v623, 7
        %v625 = vsub.s32 0, %v624
        %v626 = vrot.slane %v594, %v625
        %v635 = vadd.f32 %v598, %v542
        %v636 = vadd.f32 %v602, %v542
        %v637 = vadd.f32 %v606, %v542
        %v638 = vadd.f32 %v610, %v542
        %v639 = vadd.f32 %v614, %v542
        %v640 = vadd.f32 %v618, %v542
        %v641 = vadd.f32 %v622, %v542
        %v642 = vadd.f32 %v626, %v542
        %v643 = vld [vmem:[%s4] sm:$0x1]
        %v645 = vlaneseq
        %v646 = vshrl.u32 %v645, 7
        %v647 = vsub.s32 0, %v646
        %v648 = vrot.slane %v643, %v647
        %v650 = vadd.f32 %v635, %v648
        %v651 = vadd.f32 %v636, %v648
        %v652 = vadd.f32 %v637, %v648
        %v653 = vadd.f32 %v638, %v648
        %v654 = vadd.f32 %v639, %v648
        %v655 = vadd.f32 %v640, %v648
        %v656 = vadd.f32 %v641, %v648
        %v657 = vadd.f32 %v642, %v648
        %v658 = vmul.f32 %v650, 0.5
        %v659 = vmul.f32 %v651, 0.5
        %v660 = vmul.f32 %v652, 0.5
        %v661 = vmul.f32 %v653, 0.5
        %v662 = vmul.f32 %v654, 0.5
        %v663 = vmul.f32 %v655, 0.5
        %v664 = vmul.f32 %v656, 0.5
        %v665 = vmul.f32 %v657, 0.5
        %v666 = vmul.f32 %v650, %v650
        %v667 = vmul.f32 %v651, %v651
        %v668 = vmul.f32 %v652, %v652
        %v669 = vmul.f32 %v653, %v653
        %v670 = vmul.f32 %v654, %v654
        %v671 = vmul.f32 %v655, %v655
        %v672 = vmul.f32 %v656, %v656
        %v673 = vmul.f32 %v657, %v657
        %v674 = vmul.f32 %v650, %v666
        %v675 = vmul.f32 %v651, %v667
        %v676 = vmul.f32 %v652, %v668
        %v677 = vmul.f32 %v653, %v669
        %v678 = vmul.f32 %v654, %v670
        %v679 = vmul.f32 %v655, %v671
        %v680 = vmul.f32 %v656, %v672
        %v681 = vmul.f32 %v657, %v673
        %v682 = vmul.f32 %v674, 0.044715
        %v683 = vmul.f32 %v675, 0.044715
        %v684 = vmul.f32 %v676, 0.044715
        %v685 = vmul.f32 %v677, 0.044715
        %v686 = vmul.f32 %v678, 0.044715
        %v687 = vmul.f32 %v679, 0.044715
        %v688 = vmul.f32 %v680, 0.044715
        %v689 = vmul.f32 %v681, 0.044715
        %v690 = vadd.f32 %v650, %v682
        %v691 = vadd.f32 %v651, %v683
        %v692 = vadd.f32 %v652, %v684
        %v693 = vadd.f32 %v653, %v685
        %v694 = vadd.f32 %v654, %v686
        %v695 = vadd.f32 %v655, %v687
        %v696 = vadd.f32 %v656, %v688
        %v697 = vadd.f32 %v657, %v689
        %v698 = vmul.f32 %v690, 0.7978845
        %v699 = vmul.f32 %v691, 0.7978845
        %v700 = vmul.f32 %v692, 0.7978845
        %v701 = vmul.f32 %v693, 0.7978845
        %v702 = vmul.f32 %v694, 0.7978845
        %v703 = vmul.f32 %v695, 0.7978845
        %v704 = vmul.f32 %v696, 0.7978845
        %v705 = vmul.f32 %v697, 0.7978845
        %v706 = vtanh.pop %v698
        %v707 = vtanh.pop %v699
        %v708 = vtanh.pop %v700
        %v709 = vtanh.pop %v701
        %v710 = vtanh.pop %v702
        %v711 = vtanh.pop %v703
        %v712 = vtanh.pop %v704
        %v713 = vtanh.pop %v705
        %v714 = vadd.f32 %v706, 1.0
        %v715 = vadd.f32 %v707, 1.0
        %v716 = vadd.f32 %v708, 1.0
        %v717 = vadd.f32 %v709, 1.0
        %v718 = vadd.f32 %v710, 1.0
        %v719 = vadd.f32 %v711, 1.0
        %v720 = vadd.f32 %v712, 1.0
        %v721 = vadd.f32 %v713, 1.0
        %v722 = vmul.f32 %v658, %v714
        %v723 = vmul.f32 %v659, %v715
        %v724 = vmul.f32 %v660, %v716
        %v725 = vmul.f32 %v661, %v717
        %v726 = vmul.f32 %v662, %v718
        %v727 = vmul.f32 %v663, %v719
        %v728 = vmul.f32 %v664, %v720
        %v729 = vmul.f32 %v665, %v721
        %v730 = vld [vmem:[#allocation10] sm:$0xff]
        %v731 = vld [vmem:[#allocation10 + $0x8] sm:$0xff]
        %v732 = vld [vmem:[#allocation10 + $0x10] sm:$0xff]
        %v733 = vld [vmem:[#allocation10 + $0x18] sm:$0xff]
        %v734 = vld [vmem:[%s6] sm:$0x1]
        %v736 = vlaneseq
        %v737 = vshrl.u32 %v736, 7
        %v738 = vsub.s32 0, %v737
        %v739 = vrot.slane %v734, %v738
        %vm741 = vcmask 261120
        %v743 = vsel %vm741, %v722, 0
        %v746 = vsel %vm741, %v723, 0
        %v749 = vsel %vm741, %v724, 0
        %v752 = vsel %vm741, %v725, 0
        %v755 = vsel %vm741, %v726, 0
        %v758 = vsel %vm741, %v727, 0
        %v761 = vsel %vm741, %v728, 0
        %v764 = vsel %vm741, %v729, 0
        %766 = vmatprep.subr.mxu0 0.0
        %767 = vmatpush1.msra.mxu0 0.0
        %768 = vmatprep.subr.mxu0 0.0
        %769 = vmatpush1.msra.mxu0 0.0
        %770 = vmatprep.subr.mxu0 0.0
        %771 = vmatpush1.msra.mxu0 0.0
        %772 = vmatprep.subr.mxu0 0.0
        %773 = vmatpush1.msra.mxu0 0.0
        %774 = vmatprep.subr.mxu0 0.0
        %775 = vmatpush1.msra.mxu0 0.0
        %776 = vmatprep.subr.mxu0 0.0
        %777 = vmatpush1.msra.mxu0 0.0
        %778 = vmatprep.subr.mxu0 0.0
        %779 = vmatpush1.msra.mxu0 0.0
        %780 = vmatprep.subr.mxu0 0.0
        %781 = vmatpush1.msra.mxu0 0.0
        %782 = vmatprep.subr.mxu0 0.0
        %783 = vmatpush1.msra.mxu0 0.0
        %784 = vmatprep.subr.mxu0 0.0
        %785 = vmatpush1.msra.mxu0 0.0
        %786 = vmatprep.subr.mxu0 0.0
        %787 = vmatpush1.msra.mxu0 0.0
        %788 = vmatprep.subr.mxu0 0.0
        %789 = vmatpush1.msra.mxu0 0.0
        %790 = vmatprep.subr.mxu0 0.0
        %791 = vmatpush1.msra.mxu0 %v733
        %792 = vmatprep.subr.mxu0 0.0
        %793 = vmatpush1.msra.mxu0 %v732
        %794 = vmatprep.subr.mxu0 0.0
        %795 = vmatpush1.msra.mxu0 %v731
        %796 = vmatprep.subr.mxu0 0.0
        %797 = vmatpush1.msra.mxu0 %v730
        %798 = vmatprep.subr.mxu0 0.0
        %799 = vmatpush2.msra.mxu0 0.0
        %800 = vmatprep.subr.mxu0 0.0
        %801 = vmatpush2.msra.mxu0 0.0
        %802 = vmatprep.subr.mxu0 0.0
        %803 = vmatpush2.msra.mxu0 0.0
        %804 = vmatprep.subr.mxu0 0.0
        %805 = vmatpush2.msra.mxu0 0.0
        %806 = vmatprep.subr.mxu0 0.0
        %807 = vmatpush2.msra.mxu0 0.0
        %808 = vmatprep.subr.mxu0 0.0
        %809 = vmatpush2.msra.mxu0 0.0
        %810 = vmatprep.subr.mxu0 0.0
        %811 = vmatpush2.msra.mxu0 0.0
        %812 = vmatprep.subr.mxu0 0.0
        %813 = vmatpush2.msra.mxu0 0.0
        %814 = vmatprep.subr.mxu0 0.0
        %815 = vmatpush2.msra.mxu0 0.0
        %816 = vmatprep.subr.mxu0 0.0
        %817 = vmatpush2.msra.mxu0 0.0
        %818 = vmatprep.subr.mxu0 0.0
        %819 = vmatpush2.msra.mxu0 0.0
        %820 = vmatprep.subr.mxu0 0.0
        %821 = vmatpush2.msra.mxu0 0.0
        %822 = vmatprep.subr.mxu0 0.0
        %823 = vmatpush2.msra.mxu0 0.0
        %824 = vmatprep.subr.mxu0 0.0
        %825 = vmatpush2.msra.mxu0 0.0
        %826 = vmatprep.subr.mxu0 0.0
        %827 = vmatpush2.msra.mxu0 0.0
        %828 = vmatprep.subr.mxu0 0.0
        %829 = vmatpush2.msra.mxu0 0.0
        %830 = vmatprep.mubr.f32.mxu0 0.0
        %831 = vmatmul.mubr.f32.gmra.mxu0 %v743
        %v832 = vpop.f32.mrf.mxu0
        %v833 = vadd.f32 %v739, %v832
        %v834 = vpop.f32.mrf.mxu0
        %835 = vmatprep.mubr.f32.mxu0 0.0
        %836 = vmatmul.mubr.f32.gmra.mxu0 %v746
        %v837 = vpop.f32.mrf.mxu0
        %v838 = vadd.f32 %v739, %v837
        %v839 = vpop.f32.mrf.mxu0
        %840 = vmatprep.mubr.f32.mxu0 0.0
        %841 = vmatmul.mubr.f32.gmra.mxu0 %v749
        %v842 = vpop.f32.mrf.mxu0
        %v843 = vadd.f32 %v739, %v842
        %v844 = vpop.f32.mrf.mxu0
        %845 = vmatprep.mubr.f32.mxu0 0.0
        %846 = vmatmul.mubr.f32.gmra.mxu0 %v752
        %v847 = vpop.f32.mrf.mxu0
        %v848 = vadd.f32 %v739, %v847
        %v849 = vpop.f32.mrf.mxu0
        %850 = vmatprep.mubr.f32.mxu0 0.0
        %851 = vmatmul.mubr.f32.gmra.mxu0 %v755
        %v852 = vpop.f32.mrf.mxu0
        %v853 = vadd.f32 %v739, %v852
        %v854 = vpop.f32.mrf.mxu0
        %855 = vmatprep.mubr.f32.mxu0 0.0
        %856 = vmatmul.mubr.f32.gmra.mxu0 %v758
        %v857 = vpop.f32.mrf.mxu0
        %v858 = vadd.f32 %v739, %v857
        %v859 = vpop.f32.mrf.mxu0
        %860 = vmatprep.mubr.f32.mxu0 0.0
        %861 = vmatmul.mubr.f32.gmra.mxu0 %v761
        %v862 = vpop.f32.mrf.mxu0
        %v863 = vadd.f32 %v739, %v862
        %v864 = vpop.f32.mrf.mxu0
        %865 = vmatprep.mubr.f32.mxu0 0.0
        %866 = vmatmul.mubr.f32.gmra.mxu0 %v764
        %v867 = vpop.f32.mrf.mxu0
        %v868 = vadd.f32 %v739, %v867
        %v869 = vpop.f32.mrf.mxu0
        %870 = vdwg.mxu0
        %871 = vst [vmem:[%s390] sm:$0xff] %v833
        %872 = vst [vmem:[%s390 + $0x8] sm:$0xff] %v838
        %873 = vst [vmem:[%s390 + $0x10] sm:$0xff] %v843
        %874 = vst [vmem:[%s390 + $0x18] sm:$0xff] %v848
        %875 = vst [vmem:[%s390 + $0x20] sm:$0xff] %v853
        %876 = vst [vmem:[%s390 + $0x28] sm:$0xff] %v858
        %877 = vst [vmem:[%s390 + $0x30] sm:$0xff] %v863
        %878 = vst [vmem:[%s390 + $0x38] sm:$0xff] %v868
        %s879 = sand.u32 %s209, 1
        %s880 = scalar_lea.sflag [#allocation4], %s879
        %s881 = sand.u32 %s209, 1
        %s882 = smul.addr %s881, 64
        %s883 = scalar_lea.vmem [#allocation11], %s882
        // Predicated region
        $region69: #{tpu_custom_call.1} parent=47 // pred_check
          %p884 = pneg %p219
        $region70: #{tpu_custom_call.1} parent=47 // pred_check_branch
          %886 = sbr.rel (%p884) target = $region72
        $region71: #{tpu_custom_call.1} parent=47 // pred_region
          %s887 = smul.u32 8, %s33
          %s889 = ssub.s32 1024, 1024
          %890 = vsyncadd %s880, %s889
          %s891 = smul.addr %s32, 8
          %s892 = sadd.s32 %s887, %s891
          %s893 = smul.addr %s892, 128
          %s894 = scalar_lea.hbm %s7, %s893
          %s895 = sshll.u32 %s883, 4
          %s896 = int_to_ptr.vmem [resolvable:$true] %s895
          %901 = dma.vmem_to_hbm [thread:$0]  %s896, 1024, %s894, %s880, 128, 128, 8
        $region72: #{tpu_custom_call.1} parent=47 // pred_fallthru
          _
      $region48: #{tpu_custom_call.1} parent=5 // pred_fallthru
        _
      %p902 = scmp.le.s32.totalorder 2, %s23
      // Predicated region
      $region73: #{tpu_custom_call.1} parent=5 // pred_check
        %p903 = pneg %p902
      $region74: #{tpu_custom_call.1} parent=5 // pred_check_branch
        %905 = sbr.rel (%p903) target = $region76
      $region75: #{tpu_custom_call.1} parent=5 // pred_region
        %s906 = ssub.s32 %s23, 2
        // Predicated region
        $region77: #{tpu_custom_call.1} parent=75 // pred_check
          %p907 = pneg %p225
        $region78: #{tpu_custom_call.1} parent=75 // pred_check_branch
          %909 = sbr.rel (%p907) target = $region80
        $region79: #{tpu_custom_call.1} parent=75 // pred_region
          %s910 = sand.u32 %s210, 1
          %s911 = scalar_lea.sflag [#allocation4], %s910
          %s912 = sand.u32 %s210, 1
          %s913 = smul.addr %s912, 64
          %s914 = scalar_lea.vmem [#allocation11], %s913
          %915 = dma.done %s911, 1024
        $region80: #{tpu_custom_call.1} parent=75 // pred_fallthru
          _
      $region76: #{tpu_custom_call.1} parent=5 // pred_fallthru
        _
    $region6: #{tpu_custom_call.1} parent=1 // loop_footer
      %s27 = sadd.s32 1, %s23
    $region7: #{tpu_custom_call.1} parent=1 // loop_footer_branch
      %22 = sbr.rel target = $region3
    $region8: #{tpu_custom_call.1} parent=1 // loop_exit
      _
    %916 = vsyncpa [#allocation3], 1
    %s917 = scalar_lea.sflag [#allocation3], 1
    %918 = vsyncpa %s917, 1
    %919 = vsyncpa [#allocation6], 1
    %s920 = scalar_lea.sflag [#allocation6], 1
    %921 = vsyncpa %s920, 1
    %922 = vsyncpa [#allocation9], 1
    %923 = vsyncpa [#allocation4], 1
    %s924 = scalar_lea.sflag [#allocation4], 1
    %925 = vsyncpa %s924, 1

</llo_original>
